<compile_context>
chip_gen: v5e
topology: v5e:2x2
jax: 0.10.0
libtpu: 0.0.40
codegen_flags: <defaults>
</compile_context>

<pallas_src>
import functools

import jax
import jax.numpy as jnp
from jax.experimental import pallas as pl
from jax.experimental.pallas import tpu as pltpu


def _round_up(n, m):
    return ((n + m - 1) // m) * m


def _cdiv(a, b):
    return (a + b - 1) // b


def _vmem_capacity_bytes():
    try:
        info = pltpu.get_tpu_info()
        cap = getattr(info, "vmem_capacity_bytes", None)
        if cap:
            return int(cap)
    except Exception:
        pass
    return 64 * 2**20  # conservative default (v7x per-TensorCore capacity)


_VMEM_CAP = _vmem_capacity_bytes()


def _ssvd_kernel(x_ref, w1_ref, b1_ref, w2_ref, b2_ref, o_ref, acc_ref, *,
                 h_chunk):
    """Fused MLP tile: o = relu(x @ W1 + b1) @ W2 + b2 (f32 accumulation).

    Grid is (batch_tiles, hidden_tiles).  The output block is constant across
    the hidden axis, so acc_ref accumulates partial products; the hidden width
    seen by this invocation is additionally processed in `h_chunk`-column slabs
    so the (tm, H) f32 intermediate is never fully live (VMEM/vreg pressure).
    """
    h_idx = pl.program_id(1)

    @pl.when(h_idx == 0)
    def _():
        acc_ref[...] = jnp.zeros_like(acc_ref)

    x = x_ref[...].astype(w1_ref.dtype)   # cast to compute dtype in-kernel
    th = w1_ref.shape[1]
    for start in range(0, th, h_chunk):   # static, unrolled
        stop = min(start + h_chunk, th)
        h = jnp.dot(x, w1_ref[:, start:stop],
                    preferred_element_type=jnp.float32)
        h = jnp.maximum(h + b1_ref[:, start:stop], 0.0)
        acc_ref[...] += jnp.dot(h.astype(w2_ref.dtype), w2_ref[start:stop, :],
                                preferred_element_type=jnp.float32)

    # Single fused epilogue: one pass over the (tm, D_out) output tile.
    @pl.when(h_idx == pl.num_programs(1) - 1)
    def _():
        o_ref[...] = (acc_ref[...] + b2_ref[...]).astype(o_ref.dtype)


def prepare_params(params, compute_dtype=jnp.bfloat16):
    """One-time weight cast to the MXU compute dtype (done OUTSIDE the per-call
    hot path); biases stay f32 and are reshaped to (1, N)."""
    w1, b1, w2, b2 = params
    return (w1.astype(compute_dtype),
            b1.astype(jnp.float32).reshape(1, -1),
            w2.astype(compute_dtype),
            b2.astype(jnp.float32).reshape(1, -1))


@jax.jit
def ssvd_forward(x, w1, b1, w2, b2):
    B, D_in = x.shape
    H = w1.shape[1]
    D_out = w2.shape[1]
    out_dtype = x.dtype
    x_itemsize = jnp.dtype(x.dtype).itemsize
    out_itemsize = jnp.dtype(out_dtype).itemsize
    w_itemsize = jnp.dtype(w1.dtype).itemsize

    # ---- hidden-dim strategy: weights resident vs. H-tiled grid fallback ----
    resident_w_bytes = (D_in * H + H * D_out) * w_itemsize
    if resident_w_bytes <= int(0.45 * _VMEM_CAP):
        th, nh = H, 1
        h_chunk = min(H, 2048)            # cap the f32 intermediate slab
    else:
        th = 512
        while th > 128 and H % th != 0:
            th //= 2
        if H % th != 0:
            # TODO(synk): H not a multiple of 128 with oversized weights —
            # fall back to the resident path (may exceed VMEM on v7x).
            th, nh = H, 1
        else:
            nh = H // th
        h_chunk = min(th, 2048)
    resident = (nh == 1)

    # ---- batch tile: grow until the VMEM left after the weights is used -----
    w_buf_bytes = (D_in * th + th * D_out) * w_itemsize * (1 if resident else 2)
    bias_bytes = (th * (1 if resident else 2) + D_out) * 4
    budget = int(0.70 * _VMEM_CAP) - w_buf_bytes - bias_bytes

    def tile_bytes(tm):
        return (2 * tm * D_in * x_itemsize       # double-buffered x tiles
                + 2 * tm * D_out * out_itemsize  # double-buffered out tiles
                + tm * D_out * 4                 # f32 accumulator scratch
                + tm * h_chunk * 4               # f32 hidden slab
                + tm * D_in * w_itemsize)        # in-kernel compute-dtype copy

    tm = 1024
    while tm > 16 and tile_bytes(tm) > budget:
        tm //= 2
    tm = max(16, min(tm, _round_up(B, 16)))      # multiple of 16, don't overshoot B
    # Keep >= 2 batch grid steps when the batch allows it (v7x: 2 TCs share grid).
    while tm >= 32 and _cdiv(B, tm) < 2:
        tm = max(16, (tm // 2) // 16 * 16)

    vmem_needed = w_buf_bytes + bias_bytes + tile_bytes(tm)
    vmem_limit = int(min(int(0.92 * _VMEM_CAP),
                         max(int(1.5 * vmem_needed), 8 * 2**20)))

    def spec(shape, imap, keep_resident):
        if keep_resident:
            return pl.BlockSpec(shape, imap, pipeline_mode=pl.Buffered(1))
        return pl.BlockSpec(shape, imap)

    grid = (_cdiv(B, tm), nh)
    kernel = functools.partial(_ssvd_kernel, h_chunk=h_chunk)

    return pl.pallas_call(
        kernel,
        out_shape=jax.ShapeDtypeStruct((B, D_out), out_dtype),
        grid_spec=pltpu.PrefetchScalarGridSpec(
            num_scalar_prefetch=0,
            grid=grid,
            in_specs=[
                pl.BlockSpec((tm, D_in), lambda i, h: (i, 0)),        # x tile
                spec((D_in, th), lambda i, h: (0, h), resident),      # W1
                spec((1, th), lambda i, h: (0, h), resident),         # b1
                spec((th, D_out), lambda i, h: (h, 0), resident),     # W2
                spec((1, D_out), lambda i, h: (0, 0), True),          # b2 resident
            ],
            out_specs=pl.BlockSpec((tm, D_out), lambda i, h: (i, 0)),
            scratch_shapes=[pltpu.VMEM((tm, D_out), jnp.float32)],
        ),
        compiler_params=pltpu.CompilerParams(
            dimension_semantics=("parallel", "arbitrary"),
            vmem_limit_bytes=vmem_limit),
    )(x, w1, b1, w2, b2)


def feed(prepared_params, iter_samples):
    """Stand-in for the undefined `feed(model, iter_samples)` helper: applies
    the SSVD forward to the batch of samples."""
    w1, b1, w2, b2 = prepared_params
    return ssvd_forward(iter_samples, w1, b1, w2, b2)


def init_params(key, d_in, hidden, d_out, dtype=jnp.float32):
    k1, k2, _, _ = jax.random.split(key, 4)
    w1 = jax.random.normal(k1, (d_in, hidden), dtype) * 0.02
    b1 = jnp.zeros((1, hidden), dtype)
    w2 = jax.random.normal(k2, (hidden, d_out), dtype) * 0.02
    b2 = jnp.zeros((1, d_out), dtype)
    return (w1, b1, w2, b2)


if __name__ == "__main__":
    key = jax.random.PRNGKey(0)
    kx, kp = jax.random.split(key)

    # Small, forward-consistent shapes: batch=16 samples, feature dim 32.
    B, D_in, H, D_out = 16, 32, 64, 32
    iter_samples = jax.random.normal(kx, (B, D_in), jnp.float32)
    params = init_params(kp, D_in, H, D_out)
    prepared = prepare_params(params)          # one-time bf16 weight cast

    out = feed(prepared, iter_samples)
    out = jax.block_until_ready(out)

    # Reference check in plain JAX, matching the kernel's bf16-compute /
    # f32-accumulate numerics.
    w1, b1, w2, b2 = params
    cd = jnp.bfloat16
    h_ref = jnp.dot(iter_samples.astype(cd), w1.astype(cd),
                    preferred_element_type=jnp.float32) + b1.reshape(1, -1)
    h_ref = jnp.maximum(h_ref, 0.0)
    ref = jnp.dot(h_ref.astype(cd), w2.astype(cd),
                  preferred_element_type=jnp.float32) + b2.reshape(1, -1)

    assert out.shape == (B, D_out)
    assert jnp.allclose(out, ref.astype(out.dtype), atol=2e-3, rtol=2e-3)

    print("KERNEL_OK")
</pallas_src>

<mosaic_0001>
module attributes {stable_mosaic.version = 11 : i64} {
  func.func @_ssvd_kernel(%arg0: i32, %arg1: i32, %arg2: memref<16x32xf32, #tpu.memory_space<vmem>>, %arg3: memref<32x64xbf16, #tpu.memory_space<vmem>>, %arg4: memref<1x64xf32, #tpu.memory_space<vmem>>, %arg5: memref<64x32xbf16, #tpu.memory_space<vmem>>, %arg6: memref<1x32xf32, #tpu.memory_space<vmem>>, %arg7: memref<16x32xf32, #tpu.memory_space<vmem>>, %arg8: memref<16x32xf32, #tpu.memory_space<vmem>>) attributes {dimension_semantics = [#tpu.dimension_semantics<parallel>, #tpu.dimension_semantics<arbitrary>], iteration_bounds = array<i64: 1, 1>, scalar_prefetch = 0 : i64, scratch_operands = 1 : i64, tpu.core_type = #tpu.core_type<tc>, window_params = [{transform_indices = @transform_0, window_bounds = array<i64: 16, 32>}, {pipeline_mode = #tpu.pipeline_mode<synchronous>, transform_indices = @transform_1, window_bounds = array<i64: 32, 64>}, {pipeline_mode = #tpu.pipeline_mode<synchronous>, transform_indices = @transform_2, window_bounds = array<i64: 1, 64>}, {pipeline_mode = #tpu.pipeline_mode<synchronous>, transform_indices = @transform_3, window_bounds = array<i64: 64, 32>}, {pipeline_mode = #tpu.pipeline_mode<synchronous>, transform_indices = @transform_4, window_bounds = array<i64: 1, 32>}, {transform_indices = @transform_5, window_bounds = array<i64: 16, 32>}]} {
    %c0_i32 = arith.constant 0 : i32
    %0 = arith.cmpi eq, %arg1, %c0_i32 : i32
    %1 = arith.extui %0 : i1 to i32
    %c0_i32_0 = arith.constant 0 : i32
    %2 = arith.cmpi ne, %1, %c0_i32_0 : i32
    scf.if %2 {
      %cst_16 = arith.constant 0.000000e+00 : f32
      %21 = vector.broadcast %cst_16 : f32 to vector<16x32xf32>
      %c0_17 = arith.constant 0 : index
      %c0_18 = arith.constant 0 : index
      %22 = vector.load %arg8[%c0_17, %c0_18] : memref<16x32xf32, #tpu.memory_space<vmem>>, vector<16x32xf32>
      tpu.vector_store %arg8[%c0_17, %c0_18], %21 {strides = array<i32>} : memref<16x32xf32, #tpu.memory_space<vmem>>, vector<16x32xf32>,
    } else {
    }
    %c0 = arith.constant 0 : index
    %c0_1 = arith.constant 0 : index
    %3 = vector.load %arg2[%c0, %c0_1] : memref<16x32xf32, #tpu.memory_space<vmem>>, vector<16x32xf32>
    %4 = arith.truncf %3 : vector<16x32xf32> to vector<16x32xbf16>
    %c0_2 = arith.constant 0 : index
    %c0_3 = arith.constant 0 : index
    %5 = vector.load %arg3[%c0_2, %c0_3] : memref<32x64xbf16, #tpu.memory_space<vmem>>, vector<32x64xbf16>
    %cst = arith.constant dense<0.000000e+00> : vector<16x64xf32>
    %6 = tpu.matmul %4, %5, %cst {dimension_numbers = #tpu.dot_dimension_numbers<[1], [0], [0], [1], [0, 0, 1, 1], [], []>} : vector<16x32xbf16>, vector<32x64xbf16>, vector<16x64xf32> -> vector<16x64xf32>
    %c0_4 = arith.constant 0 : index
    %c0_5 = arith.constant 0 : index
    %7 = vector.load %arg4[%c0_4, %c0_5] : memref<1x64xf32, #tpu.memory_space<vmem>>, vector<1x64xf32>
    %8 = vector.broadcast %7 : vector<1x64xf32> to vector<16x64xf32>
    %9 = arith.addf %6, %8 : vector<16x64xf32>
    %cst_6 = arith.constant 0.000000e+00 : f32
    %10 = vector.broadcast %cst_6 : f32 to vector<16x64xf32>
    %11 = arith.maximumf %9, %10 : vector<16x64xf32>
    %c0_7 = arith.constant 0 : index
    %c0_8 = arith.constant 0 : index
    %12 = vector.load %arg8[%c0_7, %c0_8] : memref<16x32xf32, #tpu.memory_space<vmem>>, vector<16x32xf32>
    %13 = arith.truncf %11 : vector<16x64xf32> to vector<16x64xbf16>
    %c0_9 = arith.constant 0 : index
    %c0_10 = arith.constant 0 : index
    %14 = vector.load %arg5[%c0_9, %c0_10] : memref<64x32xbf16, #tpu.memory_space<vmem>>, vector<64x32xbf16>
    %cst_11 = arith.constant dense<0.000000e+00> : vector<16x32xf32>
    %15 = tpu.matmul %13, %14, %cst_11 {dimension_numbers = #tpu.dot_dimension_numbers<[1], [0], [0], [1], [0, 0, 1, 1], [], []>} : vector<16x64xbf16>, vector<64x32xbf16>, vector<16x32xf32> -> vector<16x32xf32>
    %16 = arith.addf %12, %15 : vector<16x32xf32>
    %c0_12 = arith.constant 0 : index
    %c0_13 = arith.constant 0 : index
    %17 = vector.load %arg8[%c0_12, %c0_13] : memref<16x32xf32, #tpu.memory_space<vmem>>, vector<16x32xf32>
    tpu.vector_store %arg8[%c0_12, %c0_13], %16 {strides = array<i32>} : memref<16x32xf32, #tpu.memory_space<vmem>>, vector<16x32xf32>,
    %c0_i32_14 = arith.constant 0 : i32
    %18 = arith.cmpi eq, %arg1, %c0_i32_14 : i32
    %19 = arith.extui %18 : i1 to i32
    %c0_i32_15 = arith.constant 0 : i32
    %20 = arith.cmpi ne, %19, %c0_i32_15 : i32
    scf.if %20 {
      %c0_16 = arith.constant 0 : index
      %c0_17 = arith.constant 0 : index
      %21 = vector.load %arg8[%c0_16, %c0_17] : memref<16x32xf32, #tpu.memory_space<vmem>>, vector<16x32xf32>
      %c0_18 = arith.constant 0 : index
      %c0_19 = arith.constant 0 : index
      %22 = vector.load %arg6[%c0_18, %c0_19] : memref<1x32xf32, #tpu.memory_space<vmem>>, vector<1x32xf32>
      %23 = vector.broadcast %22 : vector<1x32xf32> to vector<16x32xf32>
      %24 = arith.addf %21, %23 : vector<16x32xf32>
      %c0_20 = arith.constant 0 : index
      %c0_21 = arith.constant 0 : index
      %25 = vector.load %arg7[%c0_20, %c0_21] : memref<16x32xf32, #tpu.memory_space<vmem>>, vector<16x32xf32>
      tpu.vector_store %arg7[%c0_20, %c0_21], %24 {strides = array<i32>} : memref<16x32xf32, #tpu.memory_space<vmem>>, vector<16x32xf32>,
    } else {
    }
    return
  }
  func.func @transform_0(%arg0: i32, %arg1: i32) -> (i32, i32) {
    %c0_i32 = arith.constant 0 : i32
    %c0_i32_0 = arith.constant 0 : i32
    return %arg0, %c0_i32 : i32, i32
  }
  func.func @transform_1(%arg0: i32, %arg1: i32) -> (i32, i32) {
    %c0_i32 = arith.constant 0 : i32
    %c0_i32_0 = arith.constant 0 : i32
    return %c0_i32, %arg1 : i32, i32
  }
  func.func @transform_2(%arg0: i32, %arg1: i32) -> (i32, i32) {
    %c0_i32 = arith.constant 0 : i32
    %c0_i32_0 = arith.constant 0 : i32
    return %c0_i32, %arg1 : i32, i32
  }
  func.func @transform_3(%arg0: i32, %arg1: i32) -> (i32, i32) {
    %c0_i32 = arith.constant 0 : i32
    %c0_i32_0 = arith.constant 0 : i32
    return %arg1, %c0_i32 : i32, i32
  }
  func.func @transform_4(%arg0: i32, %arg1: i32) -> (i32, i32) {
    %c0_i32 = arith.constant 0 : i32
    %c0_i32_0 = arith.constant 0 : i32
    %c0_i32_1 = arith.constant 0 : i32
    return %c0_i32, %c0_i32_0 : i32, i32
  }
  func.func @transform_5(%arg0: i32, %arg1: i32) -> (i32, i32) {
    %c0_i32 = arith.constant 0 : i32
    %c0_i32_0 = arith.constant 0 : i32
    return %arg0, %c0_i32 : i32, i32
  }
}

</mosaic_0001>

<llo_original>
// kernel: ssvd_forward.1
$region0: #{ssvd_forward.1}
  #allocation0 [shape = 'u32[]', space=smem, size = 0x4, offset = 0x4, fixed_abs, tag = 'smem constant byte address 0x4 - core index']
  #allocation1 [shape = 'u32[72,128]{1,0:T(1,128)}', space=vmem, size = 0x9000, scoped, tag = 'internal scratch']
  #allocation2 [shape = 'f32[16,32]{1,0:T(8,128)}', space=vmem, size = 0x2000, scoped, tag = 'scratch operand']
  %s0 = inlined_call_operand.vmem [shape: f32[16,32], index: 0, kind: input, shape index: {}]
  %s1 = inlined_call_operand.vmem [shape: bf16[32,64], index: 1, kind: input, shape index: {}]
  %s2 = inlined_call_operand.vmem [shape: f32[1,64], index: 2, kind: input, shape index: {}]
  %s3 = inlined_call_operand.vmem [shape: bf16[64,32], index: 3, kind: input, shape index: {}]
  %s4 = inlined_call_operand.vmem [shape: f32[1,32], index: 4, kind: input, shape index: {}]
  %s5 = inlined_call_operand.hbm [shape: f32[16,32], index: 5, kind: output, shape index: {}]
  %s6 = sld [smem:[#allocation0]]
  $region38: #{ssvd_forward.1} parent=0
    _
  %s8 = ssub.s32 1, %s6
  %s9 = scalar_select 0, %s8, %s6
  $region1: #{ssvd_forward.1} parent=0
    #allocation3 [shape = 'u8[8192]{0}', space=vmem, size = 0x2000, scoped, tag = 'output window, operand 0, single buffered']
    #allocation4 [shape = 's32[1]{0}', space=sflag, size = 0x4, scoped, tag = 'scoped memory for ssvd_forward.1']
    %10 = vsyncpa [#allocation4], 0
    // Predicated region
    $region2: #{ssvd_forward.1} parent=1 // pred_check
      _
    $region3: #{ssvd_forward.1} parent=1 // pred_check_branch
      %12 = sbr.rel (0) target = $region5
    $region4: #{ssvd_forward.1} parent=1 // pred_region
      _
    $region5: #{ssvd_forward.1} parent=1 // pred_fallthru
      _
    // Predicated region
    $region6: #{ssvd_forward.1} parent=1 // pred_check
      _
    $region7: #{ssvd_forward.1} parent=1 // pred_check_branch
      %14 = sbr.rel (0) target = $region9
    $region8: #{ssvd_forward.1} parent=1 // pred_region
      _
    $region9: #{ssvd_forward.1} parent=1 // pred_fallthru
      _
    // Predicated region
    $region10: #{ssvd_forward.1} parent=1 // pred_check
      _
    $region11: #{ssvd_forward.1} parent=1 // pred_check_branch
      %16 = sbr.rel (0) target = $region13
    $region12: #{ssvd_forward.1} parent=1 // pred_region
      _
    $region13: #{ssvd_forward.1} parent=1 // pred_fallthru
      _
    // Predicated region
    $region14: #{ssvd_forward.1} parent=1 // pred_check
      _
    $region15: #{ssvd_forward.1} parent=1 // pred_check_branch
      %18 = sbr.rel (0) target = $region17
    $region16: #{ssvd_forward.1} parent=1 // pred_region
      _
    $region17: #{ssvd_forward.1} parent=1 // pred_fallthru
      _
    // Predicated region
    $region18: #{ssvd_forward.1} parent=1 // pred_check
      _
    $region19: #{ssvd_forward.1} parent=1 // pred_check_branch
      %20 = sbr.rel (0) target = $region21
    $region20: #{ssvd_forward.1} parent=1 // pred_region
      _
    $region21: #{ssvd_forward.1} parent=1 // pred_fallthru
      _
    %p22 = scmp.eq.s32.totalorder 0, 0
    // Predicated region
    $region22: #{ssvd_forward.1} parent=1 // pred_check
      %p23 = pneg %p22
    $region23: #{ssvd_forward.1} parent=1 // pred_check_branch
      %25 = sbr.rel (%p23) target = $region25
    $region24: #{ssvd_forward.1} parent=1 // pred_region
      %vm26 = vcmask 261120
      %27 = vst.msk [vmem:[#allocation2] sm:$0xff] %vm26, 0.0
      %28 = vst.msk [vmem:[#allocation2 + $0x8] sm:$0xff] %vm26, 0.0
    $region25: #{ssvd_forward.1} parent=1 // pred_fallthru
      _
    %v29 = vld [vmem:[%s0] sm:$0xff]
    %v30 = vld [vmem:[%s0 + $0x8] sm:$0xff]
    %v31 = vpack.c.bf16 %v30, %v29
    %v32 = vld [vmem:[%s1] sm:$0xf]
    %v33 = vld [vmem:[%s1 + $0x4] sm:$0xf]
    %v34 = vld [vmem:[%s1 + $0x8] sm:$0xf]
    %v35 = vld [vmem:[%s1 + $0xc] sm:$0xf]
    %v36 = vld [vmem:[%s2] sm:$0x1]
    %v38 = vperm.slane %v36, 0
    %v44 = vunpack.c.l.b16 %v32
    %v45 = vunpack.c.l.b16 %v33
    %v46 = vunpack.c.l.b16 %v34
    %v47 = vunpack.c.l.b16 %v35
    %v48 = vpack.c.b16 %v45, %v44
    %v49 = vpack.c.b16 %v47, %v46
    %vm52 = vcmask 261120
    %v54 = vsel %vm52, %v31, 0
    %56 = vmatpush.bf16.msra.mxu0 0
    %57 = vmatpush.bf16.msra.mxu0 0
    %58 = vmatpush.bf16.msra.mxu0 0
    %59 = vmatpush.bf16.msra.mxu0 0
    %60 = vmatpush.bf16.msra.mxu0 0
    %61 = vmatpush.bf16.msra.mxu0 0
    %62 = vmatpush.bf16.msra.mxu0 %v49
    %63 = vmatpush.bf16.msra.mxu0 %v48
    %64 = vmatmul.bf16.gmra.mxu0 %v54
    %v65 = vpop.f32.mrf.mxu0
    %v66 = vadd.f32 %v38, %v65
    %v67 = vpop.f32.mrf.mxu0
    %v68 = vadd.f32 %v38, %v67
    %69 = vdwg.mxu0
    %v70 = vmax.f32 %v66, 0.0
    %v71 = vmax.f32 %v68, 0.0
    %v72 = vld [vmem:[#allocation2] sm:$0xff]
    %v73 = vld [vmem:[#allocation2 + $0x8] sm:$0xff]
    %v74 = vpack.c.bf16 %v71, %v70
    %v75 = vld [vmem:[%s3] sm:$0xf]
    %v76 = vld [vmem:[%s3 + $0x4] sm:$0xf]
    %v77 = vld [vmem:[%s3 + $0x8] sm:$0xf]
    %v78 = vld [vmem:[%s3 + $0xc] sm:$0xf]
    %v79 = vld [vmem:[%s3 + $0x10] sm:$0xf]
    %v80 = vld [vmem:[%s3 + $0x14] sm:$0xf]
    %v81 = vld [vmem:[%s3 + $0x18] sm:$0xf]
    %v82 = vld [vmem:[%s3 + $0x1c] sm:$0xf]
    %v91 = vunpack.c.l.b16 %v75
    %v92 = vunpack.c.l.b16 %v76
    %v93 = vunpack.c.l.b16 %v77
    %v94 = vunpack.c.l.b16 %v78
    %v95 = vunpack.c.l.b16 %v79
    %v96 = vunpack.c.l.b16 %v80
    %v97 = vunpack.c.l.b16 %v81
    %v98 = vunpack.c.l.b16 %v82
    %v99 = vpack.c.b16 %v92, %v91
    %v100 = vpack.c.b16 %v94, %v93
    %v101 = vpack.c.b16 %v96, %v95
    %v102 = vpack.c.b16 %v98, %v97
    %vm107 = vcmask 523264
    %v109 = vsel %vm107, %v74, 0
    %111 = vmatpush.bf16.msra.mxu0 0
    %112 = vmatpush.bf16.msra.mxu0 0
    %113 = vmatpush.bf16.msra.mxu0 0
    %114 = vmatpush.bf16.msra.mxu0 0
    %115 = vmatpush.bf16.msra.mxu0 %v102
    %116 = vmatpush.bf16.msra.mxu0 %v101
    %117 = vmatpush.bf16.msra.mxu0 %v100
    %118 = vmatpush.bf16.msra.mxu0 %v99
    %119 = vmatmul.bf16.gmra.mxu0 %v109
    %v120 = vpop.f32.mrf.mxu0
    %v121 = vadd.f32 0.0, %v120
    %v122 = vpop.f32.mrf.mxu0
    %v123 = vadd.f32 0.0, %v122
    %124 = vdwg.mxu0
    %v125 = vadd.f32 %v72, %v121
    %v126 = vadd.f32 %v73, %v123
    %127 = vst.msk [vmem:[#allocation2] sm:$0xff] %vm52, %v125
    %128 = vst.msk [vmem:[#allocation2 + $0x8] sm:$0xff] %vm52, %v126
    // Predicated region
    $region26: #{ssvd_forward.1} parent=1 // pred_check
      %p129 = pneg %p22
    $region27: #{ssvd_forward.1} parent=1 // pred_check_branch
      %131 = sbr.rel (%p129) target = $region29
    $region28: #{ssvd_forward.1} parent=1 // pred_region
      %v132 = vld [vmem:[#allocation2] sm:$0xff]
      %v133 = vld [vmem:[#allocation2 + $0x8] sm:$0xff]
      %v134 = vld [vmem:[%s4] sm:$0x1]
      %v136 = vperm.slane %v134, 0
      %v138 = vadd.f32 %v132, %v136
      %v139 = vadd.f32 %v133, %v136
      %140 = vst.msk [vmem:[#allocation3] sm:$0xff] %vm52, %v138
      %141 = vst.msk [vmem:[#allocation3 + $0x8] sm:$0xff] %vm52, %v139
    $region29: #{ssvd_forward.1} parent=1 // pred_fallthru
      _
    // Predicated region
    $region30: #{ssvd_forward.1} parent=1 // pred_check
      _
    $region31: #{ssvd_forward.1} parent=1 // pred_check_branch
      %143 = sbr.rel (0) target = $region33
    $region32: #{ssvd_forward.1} parent=1 // pred_region
      %145 = vsyncadd [#allocation4], 0
      %s146 = sshll.u32 [#allocation3], 4
      %s147 = int_to_ptr.vmem [resolvable:$true] %s146
      %s148 = sshll.u32 %s5, 4
      %s149 = int_to_ptr.hbm [resolvable:$true] %s148
      %154 = dma.vmem_to_hbm [thread:$0]  %s147, 256, %s149, [#allocation4], 128, 128, 8
    $region33: #{ssvd_forward.1} parent=1 // pred_fallthru
      _
    // Predicated region
    $region34: #{ssvd_forward.1} parent=1 // pred_check
      _
    $region35: #{ssvd_forward.1} parent=1 // pred_check_branch
      %156 = sbr.rel (0) target = $region37
    $region36: #{ssvd_forward.1} parent=1 // pred_region
      %158 = dma.done [#allocation4], 256
    $region37: #{ssvd_forward.1} parent=1 // pred_fallthru
      _
    %159 = vsyncpa [#allocation4], 1

</llo_original>
